<compile_context>
chip_gen: v7x
topology: tpu7x:2x2x1
jax: 0.10.0
libtpu: 0.0.40
codegen_flags: <defaults>
</compile_context>

<pallas_src>
import functools

import jax
import jax.numpy as jnp
from jax.experimental import pallas as pl
from jax.experimental.pallas import tpu as pltpu

_BN_EPS = 1e-5
_COMPUTE_DTYPE = jnp.bfloat16   # MXU-native; accumulation stays f32
_LANE = 128

# Tile targets for the plain (final) Linear.
_TM, _TN, _TK = 512, 256, 512


# ---------------------------------------------------------------------------
# VMEM budget / tile selection
# ---------------------------------------------------------------------------

@functools.lru_cache(maxsize=None)
def _vmem_limit_bytes():
    """Scoped-VMEM limit request.  Explicit fallback (v7x has 64 MiB/TC)."""
    try:
        cap = int(pltpu.get_tpu_info().vmem_capacity_bytes)
    except Exception:
        cap = 64 * 1024 * 1024          # conservative: v7x per-TensorCore VMEM
    return int(min(cap * 3 // 4, 96 * 1024 * 1024))


def _compiler_params(dim_semantics):
    return pltpu.CompilerParams(dimension_semantics=dim_semantics,
                                vmem_limit_bytes=_vmem_limit_bytes())


def _pick_tile(dim, target):
    if dim <= target:
        return dim
    t = target
    while t >= 128 and dim % t != 0:
        t //= 2
    return t if (t >= 128 and dim % t == 0) else dim


def _tn_candidates(out_dim):
    """Preferred output-tile widths, best first: >=2 tiles of width 256
    (megacore on v7x, full MXU column width on v6e/v7x), then 512, 256, 128,
    then the full (possibly small / odd) dimension."""
    cands = []
    if out_dim % 256 == 0 and out_dim >= 512:
        cands.append(256)
    if out_dim % 512 == 0:
        cands.append(512)
    if out_dim % 256 == 0:
        cands.append(256)
    if out_dim % 128 == 0:
        cands.append(128)
    cands.append(out_dim)
    seen, out = set(), []
    for t in cands:
        if t not in seen:
            seen.add(t)
            out.append(t)
    return out


def _tk_candidates(in_dim):
    cands = [in_dim]                    # X-resident (preferred)
    for t in (1024, 512, 256, 128):
        if t < in_dim and in_dim % t == 0:
            cands.append(t)
    return cands


def _hidden_vmem_bytes(n, tk, tn):
    """Working set of the fused hidden-layer kernel (double-buffered blocks)."""
    x_bytes = 2 * n * tk * 2            # bf16 activations
    w_bytes = 2 * tk * tn * 2           # bf16 weights
    acc_bytes = n * tn * 4              # f32 accumulator / y intermediate
    out_bytes = 2 * n * tn * 2          # bf16 output blocks
    vec_bytes = 2 * 3 * tn * 4          # bias / gamma / beta
    return x_bytes + w_bytes + acc_bytes + out_bytes + vec_bytes


def _select_hidden_tiles(n, in_dim, out_dim, budget):
    tn_pref = _tn_candidates(out_dim)
    tk_cands = _tk_candidates(in_dim)
    # 1) X-resident: tk = in_dim -> X read from HBM exactly once.
    for tn in tn_pref:
        if _hidden_vmem_bytes(n, in_dim, tn) <= budget:
            return in_dim, tn
    # 2) X re-streamed: maximize tn first (fewer j passes -> less HBM re-read
    #    of X), then shrink tk (only multiplies grid steps, not MXU width).
    for tn in sorted(set(tn_pref), reverse=True):
        for tk in (tk_cands[1:] or tk_cands):
            if _hidden_vmem_bytes(n, tk, tn) <= budget:
                return tk, tn
    # TODO(synk): for batches so large that even the smallest tiles exceed the
    # VMEM budget, switch to an M-tiled two-pass BN kernel (partial
    # sum / sum-of-squares into a (1, OUT) scratch, then a normalize pass).
    return min(tk_cands), min(tn_pref)


# ---------------------------------------------------------------------------
# Kernels
# ---------------------------------------------------------------------------

def _bn_relu_epilogue(y, gamma, beta):
    """y: (N, tn) f32; gamma/beta: (1, tn) f32.  Training-mode (biased) BN."""
    inv_n = 1.0 / y.shape[0]
    mean = jnp.sum(y, axis=0, keepdims=True) * inv_n
    # Clamp single-pass variance: E[y^2]-E[y]^2 can cancel slightly negative.
    var = jnp.maximum(jnp.sum(y * y, axis=0, keepdims=True) * inv_n - mean * mean,
                      0.0)
    scale = gamma * jax.lax.rsqrt(var + _BN_EPS)     # rsqrt -> EUP (free slot)
    shift = beta - mean * scale
    return jnp.maximum(y * scale + shift, 0.0)


def _linear_bn_relu_kernel(x_ref, w_ref, b_ref, g_ref, beta_ref, o_ref, acc_ref):
    """grid = (OUT//tn, IN//tk); batch axis whole in one block."""
    k = pl.program_id(1)

    @pl.when(k == 0)
    def _():
        acc_ref[...] = jnp.zeros_like(acc_ref)

    acc_ref[...] += jnp.dot(x_ref[...], w_ref[...],
                            preferred_element_type=jnp.float32)

    @pl.when(k == pl.num_programs(1) - 1)
    def _():
        y = acc_ref[...] + b_ref[...]
        o_ref[...] = _bn_relu_epilogue(y, g_ref[...], beta_ref[...]).astype(o_ref.dtype)


def _linear_bn_relu_single_k_kernel(x_ref, w_ref, b_ref, g_ref, beta_ref, o_ref):
    """grid = (OUT//tn,); single reduction step -> no scratch accumulator."""
    y = jnp.dot(x_ref[...], w_ref[...],
                preferred_element_type=jnp.float32) + b_ref[...]
    o_ref[...] = _bn_relu_epilogue(y, g_ref[...], beta_ref[...]).astype(o_ref.dtype)


def _linear_kernel(x_ref, w_ref, b_ref, o_ref, acc_ref):
    """grid = (N//tm, OUT//tn, IN//tk)."""
    k = pl.program_id(2)

    @pl.when(k == 0)
    def _():
        acc_ref[...] = jnp.zeros_like(acc_ref)

    acc_ref[...] += jnp.dot(x_ref[...], w_ref[...],
                            preferred_element_type=jnp.float32)

    @pl.when(k == pl.num_programs(2) - 1)
    def _():
        o_ref[...] = (acc_ref[...] + b_ref[...]).astype(o_ref.dtype)


def _linear_single_k_kernel(x_ref, w_ref, b_ref, o_ref):
    """grid = (N//tm, OUT//tn); single reduction step -> no scratch."""
    y = jnp.dot(x_ref[...], w_ref[...],
                preferred_element_type=jnp.float32) + b_ref[...]
    o_ref[...] = y.astype(o_ref.dtype)


# ---------------------------------------------------------------------------
# Wrappers
# ---------------------------------------------------------------------------

def linear_bn_relu(x, w, b, gamma, beta):
    """Fused Linear + BatchNorm1d(training) + ReLU.
    x: (N, IN) bf16; w: (IN, OUT) bf16 pre-transposed; b/gamma/beta: (1, OUT) f32."""
    n, in_dim = x.shape
    out_dim = w.shape[1]
    budget = int(_vmem_limit_bytes() * 0.9)
    tk, tn = _select_hidden_tiles(n, in_dim, out_dim, budget)
    jj, kk = out_dim // tn, in_dim // tk

    if kk == 1:
        # X block index is invariant across j steps -> X DMA'd from HBM once.
        return pl.pallas_call(
            _linear_bn_relu_single_k_kernel,
            out_shape=jax.ShapeDtypeStruct((n, out_dim), x.dtype),
            grid=(jj,),
            in_specs=[
                pl.BlockSpec((n, in_dim), lambda j: (0, 0)),
                pl.BlockSpec((in_dim, tn), lambda j: (0, j)),
                pl.BlockSpec((1, tn), lambda j: (0, j)),
                pl.BlockSpec((1, tn), lambda j: (0, j)),
                pl.BlockSpec((1, tn), lambda j: (0, j)),
            ],
            out_specs=pl.BlockSpec((n, tn), lambda j: (0, j)),
            compiler_params=_compiler_params(("parallel",)),
        )(x, w, b, gamma, beta)

    return pl.pallas_call(
        _linear_bn_relu_kernel,
        out_shape=jax.ShapeDtypeStruct((n, out_dim), x.dtype),
        grid=(jj, kk),   # reduction axis last
        in_specs=[
            pl.BlockSpec((n, tk), lambda j, k: (0, k)),
            pl.BlockSpec((tk, tn), lambda j, k: (k, j)),
            pl.BlockSpec((1, tn), lambda j, k: (0, j)),
            pl.BlockSpec((1, tn), lambda j, k: (0, j)),
            pl.BlockSpec((1, tn), lambda j, k: (0, j)),
        ],
        out_specs=pl.BlockSpec((n, tn), lambda j, k: (0, j)),
        scratch_shapes=[pltpu.VMEM((n, tn), jnp.float32)],
        compiler_params=_compiler_params(("parallel", "arbitrary")),
    )(x, w, b, gamma, beta)


def linear(x, w, b, *, out_dtype=jnp.float32):
    """Plain Linear.  x: (N, IN) bf16; w: (IN, OUT) bf16; b: (1, OUT) f32."""
    n, in_dim = x.shape
    out_dim = w.shape[1]
    tm = _pick_tile(n, _TM)
    tn = _pick_tile(out_dim, _TN)
    tk = in_dim if in_dim <= 1024 else _pick_tile(in_dim, _TK)
    kk = in_dim // tk
    grid_mn = (n // tm, out_dim // tn)

    if kk == 1:
        return pl.pallas_call(
            _linear_single_k_kernel,
            out_shape=jax.ShapeDtypeStruct((n, out_dim), out_dtype),
            grid=grid_mn,
            in_specs=[
                pl.BlockSpec((tm, in_dim), lambda i, j: (i, 0)),
                pl.BlockSpec((in_dim, tn), lambda i, j: (0, j)),
                pl.BlockSpec((1, tn), lambda i, j: (0, j)),
            ],
            out_specs=pl.BlockSpec((tm, tn), lambda i, j: (i, j)),
            compiler_params=_compiler_params(("parallel", "parallel")),
        )(x, w, b)

    return pl.pallas_call(
        _linear_kernel,
        out_shape=jax.ShapeDtypeStruct((n, out_dim), out_dtype),
        grid=grid_mn + (kk,),
        in_specs=[
            pl.BlockSpec((tm, tk), lambda i, j, k: (i, k)),
            pl.BlockSpec((tk, tn), lambda i, j, k: (k, j)),
            pl.BlockSpec((1, tn), lambda i, j, k: (0, j)),
        ],
        out_specs=pl.BlockSpec((tm, tn), lambda i, j, k: (i, j)),
        scratch_shapes=[pltpu.VMEM((tm, tn), jnp.float32)],
        compiler_params=_compiler_params(("parallel", "parallel", "arbitrary")),
    )(x, w, b)


# ---------------------------------------------------------------------------
# Parameters & forward
# ---------------------------------------------------------------------------

def _round_up(v, m):
    return ((v + m - 1) // m) * m


def _pad_to(arr, shape):
    pads = [(0, s - d) for d, s in zip(arr.shape, shape)]
    return jnp.pad(arr, pads) if any(p[1] for p in pads) else arr


def init_mlp_params(key, num_layers, in_size, hidden_size, out_size,
                    compute_dtype=_COMPUTE_DTYPE):
    """PyTorch-style init U(-1/sqrt(fan_in), 1/sqrt(fan_in)) at the REAL sizes,
    then zero-padded so every output/feature dim is a multiple of 128
    (lane-dense stores, full MXU width).  Weights stored as (in, out) bf16."""
    out_p = _round_up(out_size, _LANE)
    hid_p = _round_up(hidden_size, _LANE)
    params = {"linears": [], "bns": []}

    def _lin(k, fan_in, fan_out, pad_in, pad_out):
        kw, kb = jax.random.split(k)
        bound = 1.0 / float(fan_in) ** 0.5
        w = jax.random.uniform(kw, (fan_in, fan_out), jnp.float32, -bound, bound)
        b = jax.random.uniform(kb, (fan_out,), jnp.float32, -bound, bound)
        w = _pad_to(w, (pad_in, pad_out)).astype(compute_dtype)
        b = _pad_to(b, (pad_out,)).reshape(1, pad_out)
        return w, b

    if num_layers == 1:
        key, k = jax.random.split(key)
        params["linears"].append(_lin(k, in_size, out_size, in_size, out_p))
        return params

    key, k = jax.random.split(key)
    params["linears"].append(_lin(k, in_size, hidden_size, in_size, hid_p))
    for _ in range(num_layers - 2):
        key, k = jax.random.split(key)
        params["linears"].append(_lin(k, hidden_size, hidden_size, hid_p, hid_p))
    key, k = jax.random.split(key)
    params["linears"].append(_lin(k, hidden_size, out_size, hid_p, out_p))
    for _ in range(num_layers - 1):
        params["bns"].append((jnp.ones((1, hid_p), jnp.float32),
                              jnp.zeros((1, hid_p), jnp.float32)))
    # TODO(synk): PyTorch BatchNorm1d running_mean/var (eval-mode state) is not
    # tracked; this implements the training-mode forward only.
    return params


def mlp_forward(params, x, num_layers, out_size, compute_dtype=_COMPUTE_DTYPE):
    if num_layers == 1:
        w, b = params["linears"][0]
        y = linear(x.astype(compute_dtype), w, b, out_dtype=jnp.float32)
    else:
        # TODO(synk): when the first hidden layer is X-resident (tk == in_dim),
        # accept f32 x directly and cast inside the kernel to skip this pass.
        h = x.astype(compute_dtype)
        for layer in range(num_layers - 1):
            w, b = params["linears"][layer]
            gamma, beta = params["bns"][layer]
            h = linear_bn_relu(h, w, b, gamma, beta)   # stays bf16 between layers
        w, b = params["linears"][-1]
        y = linear(h, w, b, out_dtype=jnp.float32)
    return y if y.shape[1] == out_size else y[:, :out_size]


def _reference_forward(params, x, num_layers, out_size,
                       compute_dtype=_COMPUTE_DTYPE):
    """Pure-JAX reference mirroring the kernel's bf16-matmul / f32-epilogue math."""
    if num_layers == 1:
        w, b = params["linears"][0]
        y = jnp.dot(x.astype(compute_dtype), w,
                    preferred_element_type=jnp.float32) + b
        return y[:, :out_size]
    h = x.astype(compute_dtype)
    for layer in range(num_layers - 1):
        w, b = params["linears"][layer]
        gamma, beta = params["bns"][layer]
        y = jnp.dot(h, w, preferred_element_type=jnp.float32) + b
        mean = jnp.mean(y, axis=0, keepdims=True)
        var = jnp.maximum(jnp.mean(y * y, axis=0, keepdims=True) - mean * mean, 0.0)
        z = (y - mean) * jax.lax.rsqrt(var + _BN_EPS) * gamma + beta
        h = jnp.maximum(z, 0.0).astype(compute_dtype)
    w, b = params["linears"][-1]
    y = jnp.dot(h, w, preferred_element_type=jnp.float32) + b
    return y[:, :out_size]


if __name__ == "__main__":
    num_layers, in_size, hidden_size, out_size = 3, 16, 32, 8
    batch = 8

    key = jax.random.PRNGKey(0)
    kx, kp = jax.random.split(key)
    x = jax.random.normal(kx, (batch, in_size), jnp.float32)

    # MLP path (Linear -> BN -> ReLU, ..., Linear)
    params = init_mlp_params(kp, num_layers, in_size, hidden_size, out_size)
    fwd = jax.jit(functools.partial(mlp_forward, num_layers=num_layers,
                                    out_size=out_size))
    out = jax.block_until_ready(fwd(params, x))
    ref = _reference_forward(params, x, num_layers, out_size)
    assert out.shape == (batch, out_size)
    assert jnp.allclose(out, ref, atol=2e-3, rtol=2e-3), "mismatch vs reference (MLP)"

    # Pure-linear path (num_layers == 1)
    params1 = init_mlp_params(kp, 1, in_size, hidden_size, out_size)
    out1 = jax.block_until_ready(mlp_forward(params1, x, 1, out_size))
    ref1 = _reference_forward(params1, x, 1, out_size)
    assert out1.shape == (batch, out_size)
    assert jnp.allclose(out1, ref1, atol=2e-3, rtol=2e-3), "mismatch vs reference (linear)"

    print("KERNEL_OK")
</pallas_src>

<mosaic_0001>
module attributes {stable_mosaic.version = 11 : i64} {
  func.func @_linear_single_k_kernel(%arg0: i32, %arg1: i32, %arg2: memref<8x128xbf16, #tpu.memory_space<vmem>>, %arg3: memref<128x128xbf16, #tpu.memory_space<vmem>>, %arg4: memref<1x128xf32, #tpu.memory_space<vmem>>, %arg5: memref<8x128xf32, #tpu.memory_space<vmem>>) attributes {dimension_semantics = [#tpu.dimension_semantics<parallel>, #tpu.dimension_semantics<parallel>], iteration_bounds = array<i64: 1, 1>, scalar_prefetch = 0 : i64, scratch_operands = 0 : i64, tpu.core_type = #tpu.core_type<tc>, window_params = [{transform_indices = @transform_0, window_bounds = array<i64: 8, 128>}, {transform_indices = @transform_1, window_bounds = array<i64: 128, 128>}, {transform_indices = @transform_2, window_bounds = array<i64: 1, 128>}, {transform_indices = @transform_3, window_bounds = array<i64: 8, 128>}]} {
    %c0 = arith.constant 0 : index
    %c0_0 = arith.constant 0 : index
    %0 = vector.load %arg2[%c0, %c0_0] : memref<8x128xbf16, #tpu.memory_space<vmem>>, vector<8x128xbf16>
    %c0_1 = arith.constant 0 : index
    %c0_2 = arith.constant 0 : index
    %1 = vector.load %arg3[%c0_1, %c0_2] : memref<128x128xbf16, #tpu.memory_space<vmem>>, vector<128x128xbf16>
    %cst = arith.constant dense<0.000000e+00> : vector<8x128xf32>
    %2 = tpu.matmul %0, %1, %cst {dimension_numbers = #tpu.dot_dimension_numbers<[1], [0], [0], [1], [0, 0, 1, 1], [], []>} : vector<8x128xbf16>, vector<128x128xbf16>, vector<8x128xf32> -> vector<8x128xf32>
    %c0_3 = arith.constant 0 : index
    %c0_4 = arith.constant 0 : index
    %3 = vector.load %arg4[%c0_3, %c0_4] : memref<1x128xf32, #tpu.memory_space<vmem>>, vector<1x128xf32>
    %4 = vector.broadcast %3 : vector<1x128xf32> to vector<8x128xf32>
    %5 = arith.addf %2, %4 : vector<8x128xf32>
    %c0_5 = arith.constant 0 : index
    %c0_6 = arith.constant 0 : index
    %6 = vector.load %arg5[%c0_5, %c0_6] : memref<8x128xf32, #tpu.memory_space<vmem>>, vector<8x128xf32>
    tpu.vector_store %arg5[%c0_5, %c0_6], %5 {strides = array<i32>} : memref<8x128xf32, #tpu.memory_space<vmem>>, vector<8x128xf32>,
    return
  }
  func.func @transform_0(%arg0: i32, %arg1: i32) -> (i32, i32) {
    %c0_i32 = arith.constant 0 : i32
    %c0_i32_0 = arith.constant 0 : i32
    return %arg0, %c0_i32 : i32, i32
  }
  func.func @transform_1(%arg0: i32, %arg1: i32) -> (i32, i32) {
    %c0_i32 = arith.constant 0 : i32
    %c0_i32_0 = arith.constant 0 : i32
    return %c0_i32, %arg1 : i32, i32
  }
  func.func @transform_2(%arg0: i32, %arg1: i32) -> (i32, i32) {
    %c0_i32 = arith.constant 0 : i32
    %c0_i32_0 = arith.constant 0 : i32
    return %c0_i32, %arg1 : i32, i32
  }
  func.func @transform_3(%arg0: i32, %arg1: i32) -> (i32, i32) {
    %c0_i32 = arith.constant 0 : i32
    return %arg0, %arg1 : i32, i32
  }
}

module attributes {stable_mosaic.version = 11 : i64} {
  func.func @_linear_bn_relu_single_k_kernel(%arg0: i32, %arg1: memref<8x16xbf16, #tpu.memory_space<vmem>>, %arg2: memref<16x128xbf16, #tpu.memory_space<vmem>>, %arg3: memref<1x128xf32, #tpu.memory_space<vmem>>, %arg4: memref<1x128xf32, #tpu.memory_space<vmem>>, %arg5: memref<1x128xf32, #tpu.memory_space<vmem>>, %arg6: memref<8x128xbf16, #tpu.memory_space<vmem>>) attributes {dimension_semantics = [#tpu.dimension_semantics<parallel>], iteration_bounds = array<i64: 1>, scalar_prefetch = 0 : i64, scratch_operands = 0 : i64, tpu.core_type = #tpu.core_type<tc>, window_params = [{pipeline_mode = #tpu.pipeline_mode<synchronous>, transform_indices = @transform_0, window_bounds = array<i64: 8, 16>}, {transform_indices = @transform_1, window_bounds = array<i64: 16, 128>}, {transform_indices = @transform_2, window_bounds = array<i64: 1, 128>}, {transform_indices = @transform_3, window_bounds = array<i64: 1, 128>}, {transform_indices = @transform_4, window_bounds = array<i64: 1, 128>}, {transform_indices = @transform_5, window_bounds = array<i64: 8, 128>}]} {
    %c0 = arith.constant 0 : index
    %c0_0 = arith.constant 0 : index
    %0 = vector.load %arg1[%c0, %c0_0] : memref<8x16xbf16, #tpu.memory_space<vmem>>, vector<8x16xbf16>
    %c0_1 = arith.constant 0 : index
    %c0_2 = arith.constant 0 : index
    %1 = vector.load %arg2[%c0_1, %c0_2] : memref<16x128xbf16, #tpu.memory_space<vmem>>, vector<16x128xbf16>
    %cst = arith.constant dense<0.000000e+00> : vector<8x128xf32>
    %2 = tpu.matmul %0, %1, %cst {dimension_numbers = #tpu.dot_dimension_numbers<[1], [0], [0], [1], [0, 0, 1, 1], [], []>} : vector<8x16xbf16>, vector<16x128xbf16>, vector<8x128xf32> -> vector<8x128xf32>
    %c0_3 = arith.constant 0 : index
    %c0_4 = arith.constant 0 : index
    %3 = vector.load %arg3[%c0_3, %c0_4] : memref<1x128xf32, #tpu.memory_space<vmem>>, vector<1x128xf32>
    %4 = vector.broadcast %3 : vector<1x128xf32> to vector<8x128xf32>
    %5 = arith.addf %2, %4 : vector<8x128xf32>
    %c0_5 = arith.constant 0 : index
    %c0_6 = arith.constant 0 : index
    %6 = vector.load %arg4[%c0_5, %c0_6] : memref<1x128xf32, #tpu.memory_space<vmem>>, vector<1x128xf32>
    %c0_7 = arith.constant 0 : index
    %c0_8 = arith.constant 0 : index
    %7 = vector.load %arg5[%c0_7, %c0_8] : memref<1x128xf32, #tpu.memory_space<vmem>>, vector<1x128xf32>
    %cst_9 = arith.constant dense<0.000000e+00> : vector<128xf32>
    %8 = vector.multi_reduction <add>, %5, %cst_9 [0] : vector<8x128xf32> to vector<128xf32>
    %9 = vector.shape_cast %8 : vector<128xf32> to vector<1x128xf32>
    %cst_10 = arith.constant 1.250000e-01 : f32
    %10 = vector.broadcast %cst_10 : f32 to vector<1x128xf32>
    %11 = arith.mulf %9, %10 : vector<1x128xf32>
    %12 = arith.mulf %5, %5 : vector<8x128xf32>
    %cst_11 = arith.constant dense<0.000000e+00> : vector<128xf32>
    %13 = vector.multi_reduction <add>, %12, %cst_11 [0] : vector<8x128xf32> to vector<128xf32>
    %14 = vector.shape_cast %13 : vector<128xf32> to vector<1x128xf32>
    %cst_12 = arith.constant 1.250000e-01 : f32
    %15 = vector.broadcast %cst_12 : f32 to vector<1x128xf32>
    %16 = arith.mulf %14, %15 : vector<1x128xf32>
    %17 = arith.mulf %11, %11 : vector<1x128xf32>
    %18 = arith.subf %16, %17 : vector<1x128xf32>
    %cst_13 = arith.constant 0.000000e+00 : f32
    %19 = vector.broadcast %cst_13 : f32 to vector<1x128xf32>
    %20 = arith.maximumf %18, %19 : vector<1x128xf32>
    %cst_14 = arith.constant 9.99999974E-6 : f32
    %21 = vector.broadcast %cst_14 : f32 to vector<1x128xf32>
    %22 = arith.addf %20, %21 : vector<1x128xf32>
    %23 = math.rsqrt %22 : vector<1x128xf32>
    %24 = arith.mulf %6, %23 : vector<1x128xf32>
    %25 = arith.mulf %11, %24 : vector<1x128xf32>
    %26 = arith.subf %7, %25 : vector<1x128xf32>
    %27 = vector.broadcast %24 : vector<1x128xf32> to vector<8x128xf32>
    %28 = arith.mulf %5, %27 : vector<8x128xf32>
    %29 = vector.broadcast %26 : vector<1x128xf32> to vector<8x128xf32>
    %30 = arith.addf %28, %29 : vector<8x128xf32>
    %cst_15 = arith.constant 0.000000e+00 : f32
    %31 = vector.broadcast %cst_15 : f32 to vector<8x128xf32>
    %32 = arith.maximumf %30, %31 : vector<8x128xf32>
    %33 = arith.truncf %32 : vector<8x128xf32> to vector<8x128xbf16>
    %c0_16 = arith.constant 0 : index
    %c0_17 = arith.constant 0 : index
    %34 = vector.load %arg6[%c0_16, %c0_17] : memref<8x128xbf16, #tpu.memory_space<vmem>>, vector<8x128xbf16>
    tpu.vector_store %arg6[%c0_16, %c0_17], %33 {strides = array<i32>} : memref<8x128xbf16, #tpu.memory_space<vmem>>, vector<8x128xbf16>,
    return
  }
  func.func @transform_0(%arg0: i32) -> (i32, i32) {
    %c0_i32 = arith.constant 0 : i32
    %c0_i32_0 = arith.constant 0 : i32
    %c0_i32_1 = arith.constant 0 : i32
    return %c0_i32, %c0_i32_0 : i32, i32
  }
  func.func @transform_1(%arg0: i32) -> (i32, i32) {
    %c0_i32 = arith.constant 0 : i32
    %c0_i32_0 = arith.constant 0 : i32
    return %c0_i32, %arg0 : i32, i32
  }
  func.func @transform_2(%arg0: i32) -> (i32, i32) {
    %c0_i32 = arith.constant 0 : i32
    %c0_i32_0 = arith.constant 0 : i32
    return %c0_i32, %arg0 : i32, i32
  }
  func.func @transform_3(%arg0: i32) -> (i32, i32) {
    %c0_i32 = arith.constant 0 : i32
    %c0_i32_0 = arith.constant 0 : i32
    return %c0_i32, %arg0 : i32, i32
  }
  func.func @transform_4(%arg0: i32) -> (i32, i32) {
    %c0_i32 = arith.constant 0 : i32
    %c0_i32_0 = arith.constant 0 : i32
    return %c0_i32, %arg0 : i32, i32
  }
  func.func @transform_5(%arg0: i32) -> (i32, i32) {
    %c0_i32 = arith.constant 0 : i32
    %c0_i32_0 = arith.constant 0 : i32
    return %c0_i32, %arg0 : i32, i32
  }
}

module attributes {stable_mosaic.version = 11 : i64} {
  func.func @_linear_bn_relu_single_k_kernel(%arg0: i32, %arg1: memref<8x128xbf16, #tpu.memory_space<vmem>>, %arg2: memref<128x128xbf16, #tpu.memory_space<vmem>>, %arg3: memref<1x128xf32, #tpu.memory_space<vmem>>, %arg4: memref<1x128xf32, #tpu.memory_space<vmem>>, %arg5: memref<1x128xf32, #tpu.memory_space<vmem>>, %arg6: memref<8x128xbf16, #tpu.memory_space<vmem>>) attributes {dimension_semantics = [#tpu.dimension_semantics<parallel>], iteration_bounds = array<i64: 1>, scalar_prefetch = 0 : i64, scratch_operands = 0 : i64, tpu.core_type = #tpu.core_type<tc>, window_params = [{pipeline_mode = #tpu.pipeline_mode<synchronous>, transform_indices = @transform_0, window_bounds = array<i64: 8, 128>}, {transform_indices = @transform_1, window_bounds = array<i64: 128, 128>}, {transform_indices = @transform_2, window_bounds = array<i64: 1, 128>}, {transform_indices = @transform_3, window_bounds = array<i64: 1, 128>}, {transform_indices = @transform_4, window_bounds = array<i64: 1, 128>}, {transform_indices = @transform_5, window_bounds = array<i64: 8, 128>}]} {
    %c0 = arith.constant 0 : index
    %c0_0 = arith.constant 0 : index
    %0 = vector.load %arg1[%c0, %c0_0] : memref<8x128xbf16, #tpu.memory_space<vmem>>, vector<8x128xbf16>
    %c0_1 = arith.constant 0 : index
    %c0_2 = arith.constant 0 : index
    %1 = vector.load %arg2[%c0_1, %c0_2] : memref<128x128xbf16, #tpu.memory_space<vmem>>, vector<128x128xbf16>
    %cst = arith.constant dense<0.000000e+00> : vector<8x128xf32>
    %2 = tpu.matmul %0, %1, %cst {dimension_numbers = #tpu.dot_dimension_numbers<[1], [0], [0], [1], [0, 0, 1, 1], [], []>} : vector<8x128xbf16>, vector<128x128xbf16>, vector<8x128xf32> -> vector<8x128xf32>
    %c0_3 = arith.constant 0 : index
    %c0_4 = arith.constant 0 : index
    %3 = vector.load %arg3[%c0_3, %c0_4] : memref<1x128xf32, #tpu.memory_space<vmem>>, vector<1x128xf32>
    %4 = vector.broadcast %3 : vector<1x128xf32> to vector<8x128xf32>
    %5 = arith.addf %2, %4 : vector<8x128xf32>
    %c0_5 = arith.constant 0 : index
    %c0_6 = arith.constant 0 : index
    %6 = vector.load %arg4[%c0_5, %c0_6] : memref<1x128xf32, #tpu.memory_space<vmem>>, vector<1x128xf32>
    %c0_7 = arith.constant 0 : index
    %c0_8 = arith.constant 0 : index
    %7 = vector.load %arg5[%c0_7, %c0_8] : memref<1x128xf32, #tpu.memory_space<vmem>>, vector<1x128xf32>
    %cst_9 = arith.constant dense<0.000000e+00> : vector<128xf32>
    %8 = vector.multi_reduction <add>, %5, %cst_9 [0] : vector<8x128xf32> to vector<128xf32>
    %9 = vector.shape_cast %8 : vector<128xf32> to vector<1x128xf32>
    %cst_10 = arith.constant 1.250000e-01 : f32
    %10 = vector.broadcast %cst_10 : f32 to vector<1x128xf32>
    %11 = arith.mulf %9, %10 : vector<1x128xf32>
    %12 = arith.mulf %5, %5 : vector<8x128xf32>
    %cst_11 = arith.constant dense<0.000000e+00> : vector<128xf32>
    %13 = vector.multi_reduction <add>, %12, %cst_11 [0] : vector<8x128xf32> to vector<128xf32>
    %14 = vector.shape_cast %13 : vector<128xf32> to vector<1x128xf32>
    %cst_12 = arith.constant 1.250000e-01 : f32
    %15 = vector.broadcast %cst_12 : f32 to vector<1x128xf32>
    %16 = arith.mulf %14, %15 : vector<1x128xf32>
    %17 = arith.mulf %11, %11 : vector<1x128xf32>
    %18 = arith.subf %16, %17 : vector<1x128xf32>
    %cst_13 = arith.constant 0.000000e+00 : f32
    %19 = vector.broadcast %cst_13 : f32 to vector<1x128xf32>
    %20 = arith.maximumf %18, %19 : vector<1x128xf32>
    %cst_14 = arith.constant 9.99999974E-6 : f32
    %21 = vector.broadcast %cst_14 : f32 to vector<1x128xf32>
    %22 = arith.addf %20, %21 : vector<1x128xf32>
    %23 = math.rsqrt %22 : vector<1x128xf32>
    %24 = arith.mulf %6, %23 : vector<1x128xf32>
    %25 = arith.mulf %11, %24 : vector<1x128xf32>
    %26 = arith.subf %7, %25 : vector<1x128xf32>
    %27 = vector.broadcast %24 : vector<1x128xf32> to vector<8x128xf32>
    %28 = arith.mulf %5, %27 : vector<8x128xf32>
    %29 = vector.broadcast %26 : vector<1x128xf32> to vector<8x128xf32>
    %30 = arith.addf %28, %29 : vector<8x128xf32>
    %cst_15 = arith.constant 0.000000e+00 : f32
    %31 = vector.broadcast %cst_15 : f32 to vector<8x128xf32>
    %32 = arith.maximumf %30, %31 : vector<8x128xf32>
    %33 = arith.truncf %32 : vector<8x128xf32> to vector<8x128xbf16>
    %c0_16 = arith.constant 0 : index
    %c0_17 = arith.constant 0 : index
    %34 = vector.load %arg6[%c0_16, %c0_17] : memref<8x128xbf16, #tpu.memory_space<vmem>>, vector<8x128xbf16>
    tpu.vector_store %arg6[%c0_16, %c0_17], %33 {strides = array<i32>} : memref<8x128xbf16, #tpu.memory_space<vmem>>, vector<8x128xbf16>,
    return
  }
  func.func @transform_0(%arg0: i32) -> (i32, i32) {
    %c0_i32 = arith.constant 0 : i32
    %c0_i32_0 = arith.constant 0 : i32
    %c0_i32_1 = arith.constant 0 : i32
    return %c0_i32, %c0_i32_0 : i32, i32
  }
  func.func @transform_1(%arg0: i32) -> (i32, i32) {
    %c0_i32 = arith.constant 0 : i32
    %c0_i32_0 = arith.constant 0 : i32
    return %c0_i32, %arg0 : i32, i32
  }
  func.func @transform_2(%arg0: i32) -> (i32, i32) {
    %c0_i32 = arith.constant 0 : i32
    %c0_i32_0 = arith.constant 0 : i32
    return %c0_i32, %arg0 : i32, i32
  }
  func.func @transform_3(%arg0: i32) -> (i32, i32) {
    %c0_i32 = arith.constant 0 : i32
    %c0_i32_0 = arith.constant 0 : i32
    return %c0_i32, %arg0 : i32, i32
  }
  func.func @transform_4(%arg0: i32) -> (i32, i32) {
    %c0_i32 = arith.constant 0 : i32
    %c0_i32_0 = arith.constant 0 : i32
    return %c0_i32, %arg0 : i32, i32
  }
  func.func @transform_5(%arg0: i32) -> (i32, i32) {
    %c0_i32 = arith.constant 0 : i32
    %c0_i32_0 = arith.constant 0 : i32
    return %c0_i32, %arg0 : i32, i32
  }
}

</mosaic_0001>

<llo_original>
// kernel: mlp_forward.5
$region0: #{mlp_forward.5}
  #allocation0 [shape = 'u32[]', space=smem, size = 0x4, offset = 0x4, fixed_abs, tag = 'smem constant byte address 0x4 - core index']
  #allocation1 [shape = 'u32[144,128]{1,0:T(1,128)}', space=vmem, size = 0x12000, scoped, tag = 'internal scratch']
  %s0 = inlined_call_operand.vmem [shape: bf16[8,128], index: 0, kind: input, shape index: {}]
  %s1 = inlined_call_operand.vmem [shape: bf16[128,128], index: 1, kind: input, shape index: {}]
  %s2 = inlined_call_operand.vmem [shape: f32[1,128], index: 2, kind: input, shape index: {}]
  %s3 = inlined_call_operand.hbm [shape: f32[8,128], index: 3, kind: output, shape index: {}]
  %s4 = sld [smem:[#allocation0]]
  $region22: #{mlp_forward.5} parent=0
    _
  %s6 = ssub.s32 1, %s4
  %s7 = scalar_select 0, %s6, %s4
  $region1: #{mlp_forward.5} parent=0
    #allocation2 [shape = 'u8[4096]{0}', space=vmem, size = 0x1000, scoped, tag = 'output window, operand 0, single buffered']
    #allocation3 [shape = 's32[1]{0}', space=sflag, size = 0x4, scoped, tag = 'scoped memory for mlp_forward.5']
    %8 = vsyncpa [#allocation3], 0
    // Predicated region
    $region2: #{mlp_forward.5} parent=1 // pred_check
      _
    $region3: #{mlp_forward.5} parent=1 // pred_check_branch
      %10 = sbr.rel (0) target = $region5
    $region4: #{mlp_forward.5} parent=1 // pred_region
      _
    $region5: #{mlp_forward.5} parent=1 // pred_fallthru
      _
    // Predicated region
    $region6: #{mlp_forward.5} parent=1 // pred_check
      _
    $region7: #{mlp_forward.5} parent=1 // pred_check_branch
      %12 = sbr.rel (0) target = $region9
    $region8: #{mlp_forward.5} parent=1 // pred_region
      _
    $region9: #{mlp_forward.5} parent=1 // pred_fallthru
      _
    // Predicated region
    $region10: #{mlp_forward.5} parent=1 // pred_check
      _
    $region11: #{mlp_forward.5} parent=1 // pred_check_branch
      %14 = sbr.rel (0) target = $region13
    $region12: #{mlp_forward.5} parent=1 // pred_region
      _
    $region13: #{mlp_forward.5} parent=1 // pred_fallthru
      _
    %v16 = vld [vmem:[%s0] sm:$0xf]
    %v17 = vld [vmem:[%s1] sm:$0xf]
    %v18 = vld [vmem:[%s1 + $0x4] sm:$0xf]
    %v19 = vld [vmem:[%s1 + $0x8] sm:$0xf]
    %v20 = vld [vmem:[%s1 + $0xc] sm:$0xf]
    %v21 = vld [vmem:[%s1 + $0x10] sm:$0xf]
    %v22 = vld [vmem:[%s1 + $0x14] sm:$0xf]
    %v23 = vld [vmem:[%s1 + $0x18] sm:$0xf]
    %v24 = vld [vmem:[%s1 + $0x1c] sm:$0xf]
    %v25 = vld [vmem:[%s1 + $0x20] sm:$0xf]
    %v26 = vld [vmem:[%s1 + $0x24] sm:$0xf]
    %v27 = vld [vmem:[%s1 + $0x28] sm:$0xf]
    %v28 = vld [vmem:[%s1 + $0x2c] sm:$0xf]
    %v29 = vld [vmem:[%s1 + $0x30] sm:$0xf]
    %v30 = vld [vmem:[%s1 + $0x34] sm:$0xf]
    %v31 = vld [vmem:[%s1 + $0x38] sm:$0xf]
    %v32 = vld [vmem:[%s1 + $0x3c] sm:$0xf]
    %v33 = vld [vmem:[%s2] sm:$0x1]
    %v35 = vlaneseq
    %v36 = vshrl.u32 %v35, 7
    %v37 = vsub.s32 0, %v36
    %v38 = vrot.slane %v33, %v37
    %v56 = vunpack.c.l.b16 %v17
    %v57 = vunpack.c.l.b16 %v18
    %v58 = vunpack.c.l.b16 %v19
    %v59 = vunpack.c.l.b16 %v20
    %v60 = vunpack.c.l.b16 %v21
    %v61 = vunpack.c.l.b16 %v22
    %v62 = vunpack.c.l.b16 %v23
    %v63 = vunpack.c.l.b16 %v24
    %v64 = vunpack.c.l.b16 %v25
    %v65 = vunpack.c.l.b16 %v26
    %v66 = vunpack.c.l.b16 %v27
    %v67 = vunpack.c.l.b16 %v28
    %v68 = vunpack.c.l.b16 %v29
    %v69 = vunpack.c.l.b16 %v30
    %v70 = vunpack.c.l.b16 %v31
    %v71 = vunpack.c.l.b16 %v32
    %v72 = vpack.c.b16 %v57, %v56
    %v73 = vpack.c.b16 %v59, %v58
    %v74 = vpack.c.b16 %v61, %v60
    %v75 = vpack.c.b16 %v63, %v62
    %v76 = vpack.c.b16 %v65, %v64
    %v77 = vpack.c.b16 %v67, %v66
    %v78 = vpack.c.b16 %v69, %v68
    %v79 = vpack.c.b16 %v71, %v70
    %88 = vmatprep.subr.bf16.mxu0 0
    %89 = vmatpush1.bf16.msra.mxu0 %v72
    %90 = vmatprep.subr.bf16.mxu0 0
    %91 = vmatpush1.bf16.msra.mxu0 %v73
    %92 = vmatprep.subr.bf16.mxu0 0
    %93 = vmatpush1.bf16.msra.mxu0 %v74
    %94 = vmatprep.subr.bf16.mxu0 0
    %95 = vmatpush1.bf16.msra.mxu0 %v75
    %96 = vmatprep.subr.bf16.mxu0 0
    %97 = vmatpush1.bf16.msra.mxu0 %v76
    %98 = vmatprep.subr.bf16.mxu0 0
    %99 = vmatpush1.bf16.msra.mxu0 %v77
    %100 = vmatprep.subr.bf16.mxu0 0
    %101 = vmatpush1.bf16.msra.mxu0 %v78
    %102 = vmatprep.subr.bf16.mxu0 0
    %103 = vmatpush1.bf16.msra.mxu0 %v79
    %104 = vmatprep.subr.bf16.mxu0 0
    %105 = vmatpush1.bf16.msra.mxu0 0
    %106 = vmatprep.subr.bf16.mxu0 0
    %107 = vmatpush1.bf16.msra.mxu0 0
    %108 = vmatprep.subr.bf16.mxu0 0
    %109 = vmatpush1.bf16.msra.mxu0 0
    %110 = vmatprep.subr.bf16.mxu0 0
    %111 = vmatpush1.bf16.msra.mxu0 0
    %112 = vmatprep.subr.bf16.mxu0 0
    %113 = vmatpush1.bf16.msra.mxu0 0
    %114 = vmatprep.subr.bf16.mxu0 0
    %115 = vmatpush1.bf16.msra.mxu0 0
    %116 = vmatprep.subr.bf16.mxu0 0
    %117 = vmatpush1.bf16.msra.mxu0 0
    %118 = vmatprep.subr.bf16.mxu0 0
    %119 = vmatpush1.bf16.msra.mxu0 0
    %120 = vmatprep.mubr.bf16.mxu0 0
    %121 = vmatmul.mubr.bf16.gmra.mrb[0].mxu0 %v16
    %v122 = vpop.f32.mrb[0].mxu0
    %v123 = vadd.f32 %v38, %v122
    %v124 = vpop.f32.mrb[0].mxu0
    %v125 = vpop.f32.mrb[0].mxu0
    %v126 = vpop.f32.mrb[0].mxu0
    %127 = vdwg.mxu0
    %128 = vst [vmem:[#allocation2] sm:$0xff] %v123
    // Predicated region
    $region14: #{mlp_forward.5} parent=1 // pred_check
      _
    $region15: #{mlp_forward.5} parent=1 // pred_check_branch
      %130 = sbr.rel (0) target = $region17
    $region16: #{mlp_forward.5} parent=1 // pred_region
      %s132 = ssub.s32 128, 128
      %133 = vsyncadd [#allocation3], %s132
      %s135 = sshll.u32 [#allocation2], 4
      %s136 = int_to_ptr.vmem [resolvable:$true] %s135
      %138 = dma.vmem_to_hbm [thread:$0]  %s136, 128, %s3, [#allocation3]
    $region17: #{mlp_forward.5} parent=1 // pred_fallthru
      _
    // Predicated region
    $region18: #{mlp_forward.5} parent=1 // pred_check
      _
    $region19: #{mlp_forward.5} parent=1 // pred_check_branch
      %140 = sbr.rel (0) target = $region21
    $region20: #{mlp_forward.5} parent=1 // pred_region
      %141 = dma.done [#allocation3], 128
    $region21: #{mlp_forward.5} parent=1 // pred_fallthru
      _
    %142 = vsyncpa [#allocation3], 1

// kernel: mlp_forward.3
$region0: #{mlp_forward.3}
  #allocation0 [shape = 'u32[]', space=smem, size = 0x4, offset = 0x4, fixed_abs, tag = 'smem constant byte address 0x4 - core index']
  #allocation1 [shape = 'u32[144,128]{1,0:T(1,128)}', space=vmem, size = 0x12000, scoped, tag = 'internal scratch']
  %s0 = inlined_call_operand.vmem [shape: bf16[8,16], index: 0, kind: input, shape index: {}]
  %s1 = inlined_call_operand.hbm [shape: bf16[16,128], index: 1, kind: input, shape index: {}]
  %s2 = inlined_call_operand.hbm [shape: f32[1,128], index: 2, kind: input, shape index: {}]
  %s3 = inlined_call_operand.hbm [shape: f32[1,128], index: 3, kind: input, shape index: {}]
  %s4 = inlined_call_operand.hbm [shape: f32[1,128], index: 4, kind: input, shape index: {}]
  %s5 = inlined_call_operand.vmem [shape: bf16[8,128], index: 5, kind: output, shape index: {}]
  %s6 = sld [smem:[#allocation0]]
  $region46: #{mlp_forward.3} parent=0
    _
  %s8 = ssub.s32 1, %s6
  %s9 = scalar_select 0, %s8, %s6
  $region1: #{mlp_forward.3} parent=0
    #allocation2 [shape = 'u8[4096]{0}', space=vmem, size = 0x1000, scoped, tag = 'input window, operand 1, single buffered']
    #allocation3 [shape = 's32[1]{0}', space=sflag, size = 0x4, scoped, tag = 'scoped memory for mlp_forward.3']
    #allocation4 [shape = 'u8[512]{0}', space=vmem, size = 0x400, scoped, tag = 'input window, operand 2, single buffered']
    #allocation5 [shape = 's32[1]{0}', space=sflag, size = 0x4, scoped, tag = 'scoped memory for mlp_forward.3']
    #allocation6 [shape = 'u8[512]{0}', space=vmem, size = 0x400, scoped, tag = 'input window, operand 3, single buffered']
    #allocation7 [shape = 'u8[512]{0}', space=vmem, size = 0x400, scoped, tag = 'input window, operand 4, single buffered']
    #allocation8 [shape = 's32[1]{0}', space=sflag, size = 0x4, scoped, tag = 'scoped memory for mlp_forward.3']
    %10 = vsyncpa [#allocation3], 0
    %11 = vsyncpa [#allocation5], 0
    %12 = vsyncpa [#allocation8], 0
    // Predicated region
    $region2: #{mlp_forward.3} parent=1 // pred_check
      _
    $region3: #{mlp_forward.3} parent=1 // pred_check_branch
      %14 = sbr.rel (0) target = $region5
    $region4: #{mlp_forward.3} parent=1 // pred_region
      _
    $region5: #{mlp_forward.3} parent=1 // pred_fallthru
      _
    // Predicated region
    $region6: #{mlp_forward.3} parent=1 // pred_check
      _
    $region7: #{mlp_forward.3} parent=1 // pred_check_branch
      %16 = sbr.rel (0) target = $region9
    $region8: #{mlp_forward.3} parent=1 // pred_region
      %s18 = ssub.s32 128, 128
      %19 = vsyncadd [#allocation3], %s18
      %s20 = sshll.u32 [#allocation2], 4
      %s21 = int_to_ptr.vmem [resolvable:$true] %s20
      %26 = dma.hbm_to_vmem [thread:$0]  %s1, 128, %s21, [#allocation3], 64, 64, 4
    $region9: #{mlp_forward.3} parent=1 // pred_fallthru
      _
    // Predicated region
    $region10: #{mlp_forward.3} parent=1 // pred_check
      _
    $region11: #{mlp_forward.3} parent=1 // pred_check_branch
      %28 = sbr.rel (0) target = $region13
    $region12: #{mlp_forward.3} parent=1 // pred_region
      %s30 = ssub.s32 16, 16
      %31 = vsyncadd [#allocation5], %s30
      %s33 = sshll.u32 [#allocation4], 4
      %s34 = int_to_ptr.vmem [resolvable:$true] %s33
      %36 = dma.hbm_to_vmem [thread:$0]  %s2, 16, %s34, [#allocation5]
    $region13: #{mlp_forward.3} parent=1 // pred_fallthru
      _
    // Predicated region
    $region14: #{mlp_forward.3} parent=1 // pred_check
      _
    $region15: #{mlp_forward.3} parent=1 // pred_check_branch
      %38 = sbr.rel (0) target = $region17
    $region16: #{mlp_forward.3} parent=1 // pred_region
      %s40 = ssub.s32 16, 16
      %41 = vsyncadd [#allocation5], %s40
      %s43 = sshll.u32 [#allocation6], 4
      %s44 = int_to_ptr.vmem [resolvable:$true] %s43
      %46 = dma.hbm_to_vmem [thread:$0]  %s3, 16, %s44, [#allocation5]
    $region17: #{mlp_forward.3} parent=1 // pred_fallthru
      _
    // Predicated region
    $region18: #{mlp_forward.3} parent=1 // pred_check
      _
    $region19: #{mlp_forward.3} parent=1 // pred_check_branch
      %48 = sbr.rel (0) target = $region21
    $region20: #{mlp_forward.3} parent=1 // pred_region
      %s50 = ssub.s32 16, 16
      %51 = vsyncadd [#allocation8], %s50
      %s53 = sshll.u32 [#allocation7], 4
      %s54 = int_to_ptr.vmem [resolvable:$true] %s53
      %56 = dma.hbm_to_vmem [thread:$0]  %s4, 16, %s54, [#allocation8]
    $region21: #{mlp_forward.3} parent=1 // pred_fallthru
      _
    // Predicated region
    $region22: #{mlp_forward.3} parent=1 // pred_check
      _
    $region23: #{mlp_forward.3} parent=1 // pred_check_branch
      %58 = sbr.rel (0) target = $region25
    $region24: #{mlp_forward.3} parent=1 // pred_region
      %59 = dma.done [#allocation3], 128
    $region25: #{mlp_forward.3} parent=1 // pred_fallthru
      _
    // Predicated region
    $region26: #{mlp_forward.3} parent=1 // pred_check
      _
    $region27: #{mlp_forward.3} parent=1 // pred_check_branch
      %61 = sbr.rel (0) target = $region29
    $region28: #{mlp_forward.3} parent=1 // pred_region
      %62 = dma.done [#allocation5], 16
    $region29: #{mlp_forward.3} parent=1 // pred_fallthru
      _
    // Predicated region
    $region30: #{mlp_forward.3} parent=1 // pred_check
      _
    $region31: #{mlp_forward.3} parent=1 // pred_check_branch
      %64 = sbr.rel (0) target = $region33
    $region32: #{mlp_forward.3} parent=1 // pred_region
      %65 = dma.done [#allocation5], 16
    $region33: #{mlp_forward.3} parent=1 // pred_fallthru
      _
    // Predicated region
    $region34: #{mlp_forward.3} parent=1 // pred_check
      _
    $region35: #{mlp_forward.3} parent=1 // pred_check_branch
      %67 = sbr.rel (0) target = $region37
    $region36: #{mlp_forward.3} parent=1 // pred_region
      %68 = dma.done [#allocation8], 16
    $region37: #{mlp_forward.3} parent=1 // pred_fallthru
      _
    %v70 = vld [vmem:[%s0] sm:$0xf]
    %v71 = vld [vmem:[#allocation2] sm:$0xf]
    %v72 = vld [vmem:[#allocation2 + $0x4] sm:$0xf]
    %v73 = vld [vmem:[#allocation4] sm:$0x1]
    %v75 = vlaneseq
    %v76 = vshrl.u32 %v75, 7
    %v77 = vsub.s32 0, %v76
    %v78 = vrot.slane %v73, %v77
    %v82 = vunpack.c.l.b16 %v71
    %v83 = vunpack.c.l.b16 %v72
    %v84 = vpack.c.b16 %v83, %v82
    %vm86 = vcmask 130048
    %v88 = vsel %vm86, %v70, 0
    %90 = vmatprep.subr.bf16.mxu0 0
    %91 = vmatpush1.bf16.msra.mxu0 %v84
    %92 = vmatprep.subr.bf16.mxu0 0
    %93 = vmatpush1.bf16.msra.mxu0 0
    %94 = vmatprep.subr.bf16.mxu0 0
    %95 = vmatpush1.bf16.msra.mxu0 0
    %96 = vmatprep.subr.bf16.mxu0 0
    %97 = vmatpush1.bf16.msra.mxu0 0
    %98 = vmatprep.subr.bf16.mxu0 0
    %99 = vmatpush1.bf16.msra.mxu0 0
    %100 = vmatprep.subr.bf16.mxu0 0
    %101 = vmatpush1.bf16.msra.mxu0 0
    %102 = vmatprep.subr.bf16.mxu0 0
    %103 = vmatpush1.bf16.msra.mxu0 0
    %104 = vmatprep.subr.bf16.mxu0 0
    %105 = vmatpush1.bf16.msra.mxu0 0
    %106 = vmatprep.subr.bf16.mxu0 0
    %107 = vmatpush1.bf16.msra.mxu0 0
    %108 = vmatprep.subr.bf16.mxu0 0
    %109 = vmatpush1.bf16.msra.mxu0 0
    %110 = vmatprep.subr.bf16.mxu0 0
    %111 = vmatpush1.bf16.msra.mxu0 0
    %112 = vmatprep.subr.bf16.mxu0 0
    %113 = vmatpush1.bf16.msra.mxu0 0
    %114 = vmatprep.subr.bf16.mxu0 0
    %115 = vmatpush1.bf16.msra.mxu0 0
    %116 = vmatprep.subr.bf16.mxu0 0
    %117 = vmatpush1.bf16.msra.mxu0 0
    %118 = vmatprep.subr.bf16.mxu0 0
    %119 = vmatpush1.bf16.msra.mxu0 0
    %120 = vmatprep.subr.bf16.mxu0 0
    %121 = vmatpush1.bf16.msra.mxu0 0
    %122 = vmatprep.mubr.bf16.mxu0 0
    %123 = vmatmul.mubr.bf16.gmra.mrb[0].mxu0 %v88
    %v124 = vpop.f32.mrb[0].mxu0
    %v125 = vadd.f32 %v78, %v124
    %v126 = vpop.f32.mrb[0].mxu0
    %v127 = vpop.f32.mrb[0].mxu0
    %v128 = vpop.f32.mrb[0].mxu0
    %129 = vdwg.mxu0
    %v130 = vld [vmem:[#allocation6] sm:$0x1]
    %v131 = vld [vmem:[#allocation7] sm:$0x1]
    %v132 = vrot.slane %v125, 4
    %v133 = vadd.f32 %v125, %v132
    %v134 = vrot.slane %v133, 2
    %v135 = vadd.f32 %v133, %v134
    %v136 = vrot.slane %v135, 1
    %v137 = vadd.f32 %v135, %v136
    %v138 = vmul.f32 %v137, 0.125
    %v139 = vmul.f32 %v125, %v125
    %v140 = vrot.slane %v139, 4
    %v141 = vadd.f32 %v139, %v140
    %v142 = vrot.slane %v141, 2
    %v143 = vadd.f32 %v141, %v142
    %v144 = vrot.slane %v143, 1
    %v145 = vadd.f32 %v143, %v144
    %v146 = vmul.f32 %v145, 0.125
    %v147 = vmul.f32 %v138, %v138
    %v148 = vsub.f32 %v146, %v147
    %v149 = vmax.f32 %v148, 0.0
    %v150 = vadd.f32 %v149, 1e-05
    %v151 = vrsqrt.pop %v150
    %v152 = vmul.f32 %v130, %v151
    %v153 = vmul.f32 %v138, %v152
    %v154 = vsub.f32 %v131, %v153
    %v156 = vlaneseq
    %v157 = vshrl.u32 %v156, 7
    %v158 = vsub.s32 0, %v157
    %v159 = vrot.slane %v152, %v158
    %v161 = vmul.f32 %v125, %v159
    %v163 = vlaneseq
    %v164 = vshrl.u32 %v163, 7
    %v165 = vsub.s32 0, %v164
    %v166 = vrot.slane %v154, %v165
    %v168 = vadd.f32 %v161, %v166
    %v169 = vmax.f32 %v168, 0.0
    %v170 = vpack.c.bf16 %v169, %v169
    %171 = vst [vmem:[%s5] sm:$0xf] %v170
    // Predicated region
    $region38: #{mlp_forward.3} parent=1 // pred_check
      _
    $region39: #{mlp_forward.3} parent=1 // pred_check_branch
      %173 = sbr.rel (0) target = $region41
    $region40: #{mlp_forward.3} parent=1 // pred_region
      _
    $region41: #{mlp_forward.3} parent=1 // pred_fallthru
      _
    // Predicated region
    $region42: #{mlp_forward.3} parent=1 // pred_check
      _
    $region43: #{mlp_forward.3} parent=1 // pred_check_branch
      %175 = sbr.rel (0) target = $region45
    $region44: #{mlp_forward.3} parent=1 // pred_region
      _
    $region45: #{mlp_forward.3} parent=1 // pred_fallthru
      _
    %176 = vsyncpa [#allocation3], 1
    %177 = vsyncpa [#allocation5], 1
    %178 = vsyncpa [#allocation8], 1

// kernel: mlp_forward.4
$region0: #{mlp_forward.4}
  #allocation0 [shape = 'u32[]', space=smem, size = 0x4, offset = 0x4, fixed_abs, tag = 'smem constant byte address 0x4 - core index']
  #allocation1 [shape = 'u32[144,128]{1,0:T(1,128)}', space=vmem, size = 0x12000, scoped, tag = 'internal scratch']
  %s0 = inlined_call_operand.vmem [shape: bf16[8,128], index: 0, kind: input, shape index: {}]
  %s1 = inlined_call_operand.hbm [shape: bf16[128,128], index: 1, kind: input, shape index: {}]
  %s2 = inlined_call_operand.vmem [shape: f32[1,128], index: 2, kind: input, shape index: {}]
  %s3 = inlined_call_operand.hbm [shape: f32[1,128], index: 3, kind: input, shape index: {}]
  %s4 = inlined_call_operand.hbm [shape: f32[1,128], index: 4, kind: input, shape index: {}]
  %s5 = inlined_call_operand.vmem [shape: bf16[8,128], index: 5, kind: output, shape index: {}]
  %s6 = sld [smem:[#allocation0]]
  $region42: #{mlp_forward.4} parent=0
    _
  %s8 = ssub.s32 1, %s6
  %s9 = scalar_select 0, %s8, %s6
  $region1: #{mlp_forward.4} parent=0
    #allocation2 [shape = 'u8[32768]{0}', space=vmem, size = 0x8000, scoped, tag = 'input window, operand 1, single buffered']
    #allocation3 [shape = 's32[1]{0}', space=sflag, size = 0x4, scoped, tag = 'scoped memory for mlp_forward.4']
    #allocation4 [shape = 'u8[512]{0}', space=vmem, size = 0x400, scoped, tag = 'input window, operand 3, single buffered']
    #allocation5 [shape = 's32[1]{0}', space=sflag, size = 0x4, scoped, tag = 'scoped memory for mlp_forward.4']
    #allocation6 [shape = 'u8[512]{0}', space=vmem, size = 0x400, scoped, tag = 'input window, operand 4, single buffered']
    %10 = vsyncpa [#allocation3], 0
    %11 = vsyncpa [#allocation5], 0
    // Predicated region
    $region2: #{mlp_forward.4} parent=1 // pred_check
      _
    $region3: #{mlp_forward.4} parent=1 // pred_check_branch
      %13 = sbr.rel (0) target = $region5
    $region4: #{mlp_forward.4} parent=1 // pred_region
      _
    $region5: #{mlp_forward.4} parent=1 // pred_fallthru
      _
    // Predicated region
    $region6: #{mlp_forward.4} parent=1 // pred_check
      _
    $region7: #{mlp_forward.4} parent=1 // pred_check_branch
      %15 = sbr.rel (0) target = $region9
    $region8: #{mlp_forward.4} parent=1 // pred_region
      %s17 = ssub.s32 1024, 1024
      %18 = vsyncadd [#allocation3], %s17
      %s19 = sshll.u32 [#allocation2], 4
      %s20 = int_to_ptr.vmem [resolvable:$true] %s19
      %25 = dma.hbm_to_vmem [thread:$0]  %s1, 1024, %s20, [#allocation3], 64, 64, 4
    $region9: #{mlp_forward.4} parent=1 // pred_fallthru
      _
    // Predicated region
    $region10: #{mlp_forward.4} parent=1 // pred_check
      _
    $region11: #{mlp_forward.4} parent=1 // pred_check_branch
      %27 = sbr.rel (0) target = $region13
    $region12: #{mlp_forward.4} parent=1 // pred_region
      _
    $region13: #{mlp_forward.4} parent=1 // pred_fallthru
      _
    // Predicated region
    $region14: #{mlp_forward.4} parent=1 // pred_check
      _
    $region15: #{mlp_forward.4} parent=1 // pred_check_branch
      %29 = sbr.rel (0) target = $region17
    $region16: #{mlp_forward.4} parent=1 // pred_region
      %s31 = ssub.s32 16, 16
      %32 = vsyncadd [#allocation5], %s31
      %s34 = sshll.u32 [#allocation4], 4
      %s35 = int_to_ptr.vmem [resolvable:$true] %s34
      %37 = dma.hbm_to_vmem [thread:$0]  %s3, 16, %s35, [#allocation5]
    $region17: #{mlp_forward.4} parent=1 // pred_fallthru
      _
    // Predicated region
    $region18: #{mlp_forward.4} parent=1 // pred_check
      _
    $region19: #{mlp_forward.4} parent=1 // pred_check_branch
      %39 = sbr.rel (0) target = $region21
    $region20: #{mlp_forward.4} parent=1 // pred_region
      %s41 = ssub.s32 16, 16
      %42 = vsyncadd [#allocation5], %s41
      %s44 = sshll.u32 [#allocation6], 4
      %s45 = int_to_ptr.vmem [resolvable:$true] %s44
      %47 = dma.hbm_to_vmem [thread:$0]  %s4, 16, %s45, [#allocation5]
    $region21: #{mlp_forward.4} parent=1 // pred_fallthru
      _
    // Predicated region
    $region22: #{mlp_forward.4} parent=1 // pred_check
      _
    $region23: #{mlp_forward.4} parent=1 // pred_check_branch
      %49 = sbr.rel (0) target = $region25
    $region24: #{mlp_forward.4} parent=1 // pred_region
      %50 = dma.done [#allocation3], 1024
    $region25: #{mlp_forward.4} parent=1 // pred_fallthru
      _
    // Predicated region
    $region26: #{mlp_forward.4} parent=1 // pred_check
      _
    $region27: #{mlp_forward.4} parent=1 // pred_check_branch
      %52 = sbr.rel (0) target = $region29
    $region28: #{mlp_forward.4} parent=1 // pred_region
      %53 = dma.done [#allocation5], 16
    $region29: #{mlp_forward.4} parent=1 // pred_fallthru
      _
    // Predicated region
    $region30: #{mlp_forward.4} parent=1 // pred_check
      _
    $region31: #{mlp_forward.4} parent=1 // pred_check_branch
      %55 = sbr.rel (0) target = $region33
    $region32: #{mlp_forward.4} parent=1 // pred_region
      %56 = dma.done [#allocation5], 16
    $region33: #{mlp_forward.4} parent=1 // pred_fallthru
      _
    %v58 = vld [vmem:[%s0] sm:$0xf]
    %v59 = vld [vmem:[#allocation2] sm:$0xf]
    %v60 = vld [vmem:[#allocation2 + $0x4] sm:$0xf]
    %v61 = vld [vmem:[#allocation2 + $0x8] sm:$0xf]
    %v62 = vld [vmem:[#allocation2 + $0xc] sm:$0xf]
    %v63 = vld [vmem:[#allocation2 + $0x10] sm:$0xf]
    %v64 = vld [vmem:[#allocation2 + $0x14] sm:$0xf]
    %v65 = vld [vmem:[#allocation2 + $0x18] sm:$0xf]
    %v66 = vld [vmem:[#allocation2 + $0x1c] sm:$0xf]
    %v67 = vld [vmem:[#allocation2 + $0x20] sm:$0xf]
    %v68 = vld [vmem:[#allocation2 + $0x24] sm:$0xf]
    %v69 = vld [vmem:[#allocation2 + $0x28] sm:$0xf]
    %v70 = vld [vmem:[#allocation2 + $0x2c] sm:$0xf]
    %v71 = vld [vmem:[#allocation2 + $0x30] sm:$0xf]
    %v72 = vld [vmem:[#allocation2 + $0x34] sm:$0xf]
    %v73 = vld [vmem:[#allocation2 + $0x38] sm:$0xf]
    %v74 = vld [vmem:[#allocation2 + $0x3c] sm:$0xf]
    %v75 = vld [vmem:[%s2] sm:$0x1]
    %v77 = vlaneseq
    %v78 = vshrl.u32 %v77, 7
    %v79 = vsub.s32 0, %v78
    %v80 = vrot.slane %v75, %v79
    %v98 = vunpack.c.l.b16 %v59
    %v99 = vunpack.c.l.b16 %v60
    %v100 = vunpack.c.l.b16 %v61
    %v101 = vunpack.c.l.b16 %v62
    %v102 = vunpack.c.l.b16 %v63
    %v103 = vunpack.c.l.b16 %v64
    %v104 = vunpack.c.l.b16 %v65
    %v105 = vunpack.c.l.b16 %v66
    %v106 = vunpack.c.l.b16 %v67
    %v107 = vunpack.c.l.b16 %v68
    %v108 = vunpack.c.l.b16 %v69
    %v109 = vunpack.c.l.b16 %v70
    %v110 = vunpack.c.l.b16 %v71
    %v111 = vunpack.c.l.b16 %v72
    %v112 = vunpack.c.l.b16 %v73
    %v113 = vunpack.c.l.b16 %v74
    %v114 = vpack.c.b16 %v99, %v98
    %v115 = vpack.c.b16 %v101, %v100
    %v116 = vpack.c.b16 %v103, %v102
    %v117 = vpack.c.b16 %v105, %v104
    %v118 = vpack.c.b16 %v107, %v106
    %v119 = vpack.c.b16 %v109, %v108
    %v120 = vpack.c.b16 %v111, %v110
    %v121 = vpack.c.b16 %v113, %v112
    %130 = vmatprep.subr.bf16.mxu0 0
    %131 = vmatpush1.bf16.msra.mxu0 %v114
    %132 = vmatprep.subr.bf16.mxu0 0
    %133 = vmatpush1.bf16.msra.mxu0 %v115
    %134 = vmatprep.subr.bf16.mxu0 0
    %135 = vmatpush1.bf16.msra.mxu0 %v116
    %136 = vmatprep.subr.bf16.mxu0 0
    %137 = vmatpush1.bf16.msra.mxu0 %v117
    %138 = vmatprep.subr.bf16.mxu0 0
    %139 = vmatpush1.bf16.msra.mxu0 %v118
    %140 = vmatprep.subr.bf16.mxu0 0
    %141 = vmatpush1.bf16.msra.mxu0 %v119
    %142 = vmatprep.subr.bf16.mxu0 0
    %143 = vmatpush1.bf16.msra.mxu0 %v120
    %144 = vmatprep.subr.bf16.mxu0 0
    %145 = vmatpush1.bf16.msra.mxu0 %v121
    %146 = vmatprep.subr.bf16.mxu0 0
    %147 = vmatpush1.bf16.msra.mxu0 0
    %148 = vmatprep.subr.bf16.mxu0 0
    %149 = vmatpush1.bf16.msra.mxu0 0
    %150 = vmatprep.subr.bf16.mxu0 0
    %151 = vmatpush1.bf16.msra.mxu0 0
    %152 = vmatprep.subr.bf16.mxu0 0
    %153 = vmatpush1.bf16.msra.mxu0 0
    %154 = vmatprep.subr.bf16.mxu0 0
    %155 = vmatpush1.bf16.msra.mxu0 0
    %156 = vmatprep.subr.bf16.mxu0 0
    %157 = vmatpush1.bf16.msra.mxu0 0
    %158 = vmatprep.subr.bf16.mxu0 0
    %159 = vmatpush1.bf16.msra.mxu0 0
    %160 = vmatprep.subr.bf16.mxu0 0
    %161 = vmatpush1.bf16.msra.mxu0 0
    %162 = vmatprep.mubr.bf16.mxu0 0
    %163 = vmatmul.mubr.bf16.gmra.mrb[0].mxu0 %v58
    %v164 = vpop.f32.mrb[0].mxu0
    %v165 = vadd.f32 %v80, %v164
    %v166 = vpop.f32.mrb[0].mxu0
    %v167 = vpop.f32.mrb[0].mxu0
    %v168 = vpop.f32.mrb[0].mxu0
    %169 = vdwg.mxu0
    %v170 = vld [vmem:[#allocation4] sm:$0x1]
    %v171 = vld [vmem:[#allocation6] sm:$0x1]
    %v172 = vrot.slane %v165, 4
    %v173 = vadd.f32 %v165, %v172
    %v174 = vrot.slane %v173, 2
    %v175 = vadd.f32 %v173, %v174
    %v176 = vrot.slane %v175, 1
    %v177 = vadd.f32 %v175, %v176
    %v178 = vmul.f32 %v177, 0.125
    %v179 = vmul.f32 %v165, %v165
    %v180 = vrot.slane %v179, 4
    %v181 = vadd.f32 %v179, %v180
    %v182 = vrot.slane %v181, 2
    %v183 = vadd.f32 %v181, %v182
    %v184 = vrot.slane %v183, 1
    %v185 = vadd.f32 %v183, %v184
    %v186 = vmul.f32 %v185, 0.125
    %v187 = vmul.f32 %v178, %v178
    %v188 = vsub.f32 %v186, %v187
    %v189 = vmax.f32 %v188, 0.0
    %v190 = vadd.f32 %v189, 1e-05
    %v191 = vrsqrt.pop %v190
    %v192 = vmul.f32 %v170, %v191
    %v193 = vmul.f32 %v178, %v192
    %v194 = vsub.f32 %v171, %v193
    %v196 = vlaneseq
    %v197 = vshrl.u32 %v196, 7
    %v198 = vsub.s32 0, %v197
    %v199 = vrot.slane %v192, %v198
    %v201 = vmul.f32 %v165, %v199
    %v203 = vlaneseq
    %v204 = vshrl.u32 %v203, 7
    %v205 = vsub.s32 0, %v204
    %v206 = vrot.slane %v194, %v205
    %v208 = vadd.f32 %v201, %v206
    %v209 = vmax.f32 %v208, 0.0
    %v210 = vpack.c.bf16 %v209, %v209
    %211 = vst [vmem:[%s5] sm:$0xf] %v210
    // Predicated region
    $region34: #{mlp_forward.4} parent=1 // pred_check
      _
    $region35: #{mlp_forward.4} parent=1 // pred_check_branch
      %213 = sbr.rel (0) target = $region37
    $region36: #{mlp_forward.4} parent=1 // pred_region
      _
    $region37: #{mlp_forward.4} parent=1 // pred_fallthru
      _
    // Predicated region
    $region38: #{mlp_forward.4} parent=1 // pred_check
      _
    $region39: #{mlp_forward.4} parent=1 // pred_check_branch
      %215 = sbr.rel (0) target = $region41
    $region40: #{mlp_forward.4} parent=1 // pred_region
      _
    $region41: #{mlp_forward.4} parent=1 // pred_fallthru
      _
    %216 = vsyncpa [#allocation3], 1
    %217 = vsyncpa [#allocation5], 1

</llo_original>
